<compile_context>
chip_gen: v5e
topology: v5e:2x2
jax: 0.10.0
libtpu: 0.0.40
codegen_flags: <defaults>
</compile_context>

<pallas_src>
import functools

import jax
import jax.numpy as jnp
from jax.experimental import pallas as pl
from jax.experimental.pallas import tpu as pltpu


def layernorm2d_kernel(*refs, eps, has_tbias):
    """refs = (x_ref, g_ref, b_ref[, t_ref], o_ref).

    x_ref/o_ref: (TB, C, TL); g_ref/b_ref: (1, C, 1) fp32; t_ref: (TB, C, 1).
    """
    if has_tbias:
        x_ref, g_ref, b_ref, t_ref, o_ref = refs
    else:
        x_ref, g_ref, b_ref, o_ref = refs
        t_ref = None

    inv_c = jnp.float32(1.0 / x_ref.shape[1])

    # Pass 1: channel mean.  Fresh read per pass keeps the fp32 tile's live
    # range short (Mosaic can reload from VMEM instead of holding it).
    x = x_ref[...].astype(jnp.float32)
    mean = jnp.sum(x, axis=1, keepdims=True) * inv_c            # (TB, 1, TL)

    # Pass 2: centered variance (matches torch.var(dim=1, unbiased=False)
    # without the E[x^2] - mean^2 cancellation issue).
    xc = x_ref[...].astype(jnp.float32) - mean
    var = jnp.sum(xc * xc, axis=1, keepdims=True) * inv_c       # (TB, 1, TL)
    rstd = jax.lax.rsqrt(var + eps)                             # EUP

    # Pass 3: normalize + affine (+ optional fused broadcast bias, e.g. the
    # diffusion time-embedding add of ResidualBlock2d).
    y = (x_ref[...].astype(jnp.float32) - mean) * rstd
    y = y * g_ref[...] + b_ref[...]                             # bcast TB, TL
    if t_ref is not None:
        y = y + t_ref[...]                                      # bcast TL
    o_ref[...] = y.astype(o_ref.dtype)


@functools.lru_cache(maxsize=None)
def _vmem_budget():
    """Per-generation (max_tile_bytes, vmem_limit_bytes)."""
    try:
        vmem = int(pltpu.get_tpu_info().vmem_capacity_bytes)
    except Exception:
        vmem = 0
    if vmem >= 128 * 1024 * 1024:        # v5e / v6e (128 MiB VMEM)
        return 8 * 1024 * 1024, 80 * 1024 * 1024
    if vmem >= 64 * 1024 * 1024:         # v7x (64 MiB VMEM per TensorCore)
        return 4 * 1024 * 1024, 40 * 1024 * 1024
    # Unknown / small-VMEM part: small tiles, leave the scoped limit alone.
    return 2 * 1024 * 1024, None


def _choose_tiles(B, C, L, itemsize, max_tile_bytes, min_grid_steps):
    """Pick (TB, TL): TL a multiple of 128 lanes, TB a divisor of B.

    One (TB, C, TL) block is budgeted against max_tile_bytes (double-buffered
    in/out plus Mosaic intermediates multiply this ~6-8x), while keeping at
    least min_grid_steps grid steps so both v7x TensorCores get work and the
    DMA pipeline has something to overlap.
    """
    col_bytes = 128 * C * itemsize                    # bytes / 128-lane column
    n128 = pl.cdiv(L, 128)                            # 128-lane columns in L
    tl_cols_cap = max(1, max_tile_bytes // col_bytes)
    # Keep enough L-blocks so the total grid reaches min_grid_steps.
    need_l_steps = max(1, pl.cdiv(min_grid_steps, max(B, 1)))
    cols_for_steps = max(1, pl.cdiv(n128, need_l_steps))
    tl_cols = max(1, min(tl_cols_cap, n128, cols_for_steps))
    TL = 128 * tl_cols
    n_l = pl.cdiv(L, TL)

    # Block batch elements per step (amortizes ~0.35us/step) without dropping
    # below min_grid_steps or blowing the byte budget.
    tile_bytes = C * TL * itemsize
    tb_cap = max(1, max_tile_bytes // tile_bytes)
    TB = 1
    for d in range(1, B + 1):
        if B % d == 0 and d <= tb_cap and (B // d) * n_l >= min_grid_steps:
            TB = d
    return TB, TL


def layer_norm_2d(x, g, b, t=None, eps=1e-5, *, max_tile_bytes=None,
                  vmem_limit_bytes=None, min_grid_steps=4):
    """x: (B, C, H, W); g, b: (1, C, 1, 1); optional t: (B, C) broadcast bias.

    Returns LayerNorm2d(x) [+ t[:, :, None, None]] with x's dtype.
    """
    B, C, H, W = x.shape
    L = H * W
    xf = x.reshape(B, C, L)
    gf = g.reshape(1, C, 1).astype(jnp.float32)       # one-time cast, hoisted
    bf = b.reshape(1, C, 1).astype(jnp.float32)

    if max_tile_bytes is None or vmem_limit_bytes is None:
        mtb, vlb = _vmem_budget()
        max_tile_bytes = mtb if max_tile_bytes is None else max_tile_bytes
        vmem_limit_bytes = vlb if vmem_limit_bytes is None else vmem_limit_bytes

    TB, TL = _choose_tiles(B, C, L, x.dtype.itemsize, max_tile_bytes,
                           min_grid_steps)
    grid = (B // TB, pl.cdiv(L, TL))                  # partial tail L-block OK

    in_specs = [
        pl.BlockSpec((TB, C, TL), lambda bi, li: (bi, 0, li)),
        pl.BlockSpec((1, C, 1), lambda bi, li: (0, 0, 0)),   # VMEM-resident
        pl.BlockSpec((1, C, 1), lambda bi, li: (0, 0, 0)),
    ]
    operands = [xf, gf, bf]
    has_tbias = t is not None
    if has_tbias:
        tf = t.reshape(B, C, 1).astype(jnp.float32)
        in_specs.append(pl.BlockSpec((TB, C, 1), lambda bi, li: (bi, 0, 0)))
        operands.append(tf)

    cp_kwargs = dict(dimension_semantics=("parallel", "parallel"))
    if vmem_limit_bytes is not None:
        cp_kwargs["vmem_limit_bytes"] = vmem_limit_bytes

    kernel = functools.partial(layernorm2d_kernel, eps=eps,
                               has_tbias=has_tbias)
    out = pl.pallas_call(
        kernel,
        out_shape=jax.ShapeDtypeStruct((B, C, L), x.dtype),
        grid=grid,
        in_specs=in_specs,
        out_specs=pl.BlockSpec((TB, C, TL), lambda bi, li: (bi, 0, li)),
        compiler_params=pltpu.CompilerParams(**cp_kwargs),
    )(*operands)
    return out.reshape(B, C, H, W)


def layer_norm_2d_ref(x, g, b, t=None, eps=1e-5):
    xf = x.astype(jnp.float32)
    mean = jnp.mean(xf, axis=1, keepdims=True)
    var = jnp.mean((xf - mean) ** 2, axis=1, keepdims=True)
    y = (xf - mean) / jnp.sqrt(var + eps) * g + b
    if t is not None:
        y = y + t[:, :, None, None]
    return y.astype(x.dtype)


def _run_case(key, shape, dtype=jnp.float32, fuse_t=False, shift=0.0,
              atol=1e-4, rtol=1e-4, **kwargs):
    B, C, H, W = shape
    kx, kg, kb, kt = jax.random.split(key, 4)
    x = jax.random.normal(kx, (B, C, H, W), dtype=jnp.float32) + shift
    x = x.astype(dtype)
    # Module init is g=ones, b=zeros; perturb so the affine part is exercised.
    g = 1.0 + 0.1 * jax.random.normal(kg, (1, C, 1, 1), dtype=jnp.float32)
    b = 0.1 * jax.random.normal(kb, (1, C, 1, 1), dtype=jnp.float32)
    t = (0.5 * jax.random.normal(kt, (B, C), dtype=jnp.float32)
         if fuse_t else None)

    out = jax.block_until_ready(layer_norm_2d(x, g, b, t=t, eps=1e-5, **kwargs))
    ref = layer_norm_2d_ref(x, g, b, t=t, eps=1e-5)
    assert out.shape == shape and out.dtype == x.dtype
    ok = jnp.allclose(out.astype(jnp.float32), ref.astype(jnp.float32),
                      atol=atol, rtol=rtol)
    assert ok, f"mismatch for shape={shape} dtype={dtype} fuse_t={fuse_t}"


if __name__ == "__main__":
    key = jax.random.PRNGKey(0)
    k0, k1, k2, k3, k4 = jax.random.split(key, 5)

    # Aligned case (L = 256); grid stays >= min_grid_steps (no single-step
    # collapse, both v7x TensorCores get work).
    _run_case(k0, (2, 64, 16, 16))
    # Ragged case: L = 63 (partial lane block handled by the pipeline, no
    # wrapper pad/slice), C = 20 not a multiple of 8 (full-extent block dim).
    _run_case(k1, (2, 20, 7, 9))
    # Force a multi-tile grid over (B, L) with tiny tiles.
    _run_case(k2, (2, 32, 16, 32), max_tile_bytes=16 * 1024)
    # bf16 activations (halved HBM bytes) with the fused time-embedding bias.
    _run_case(k3, (2, 64, 16, 16), dtype=jnp.bfloat16, fuse_t=True,
              atol=5e-2, rtol=2e-2)
    # Mean-shifted data + ragged L: stresses the two-pass variance numerics.
    _run_case(k4, (2, 64, 12, 10), shift=20.0, fuse_t=True)

    print("KERNEL_OK")
</pallas_src>

<mosaic_0001>
module attributes {stable_mosaic.version = 11 : i64} {
  func.func @layernorm2d_kernel(%arg0: i32, %arg1: i32, %arg2: memref<1x64x128xf32, #tpu.memory_space<vmem>>, %arg3: memref<1x64x1xf32, #tpu.memory_space<vmem>>, %arg4: memref<1x64x1xf32, #tpu.memory_space<vmem>>, %arg5: memref<1x64x128xf32, #tpu.memory_space<vmem>>) attributes {dimension_semantics = [#tpu.dimension_semantics<parallel>, #tpu.dimension_semantics<parallel>], iteration_bounds = array<i64: 2, 2>, scalar_prefetch = 0 : i64, scratch_operands = 0 : i64, tpu.core_type = #tpu.core_type<tc>, window_params = [{transform_indices = @transform_0, window_bounds = array<i64: 1, 64, 128>}, {pipeline_mode = #tpu.pipeline_mode<synchronous>, transform_indices = @transform_1, window_bounds = array<i64: 1, 64, 1>}, {pipeline_mode = #tpu.pipeline_mode<synchronous>, transform_indices = @transform_2, window_bounds = array<i64: 1, 64, 1>}, {transform_indices = @transform_3, window_bounds = array<i64: 1, 64, 128>}]} {
    %c0 = arith.constant 0 : index
    %c0_0 = arith.constant 0 : index
    %c0_1 = arith.constant 0 : index
    %0 = vector.load %arg2[%c0, %c0_0, %c0_1] : memref<1x64x128xf32, #tpu.memory_space<vmem>>, vector<1x64x128xf32>
    %cst = arith.constant dense<0.000000e+00> : vector<1x128xf32>
    %1 = vector.multi_reduction <add>, %0, %cst [1] : vector<1x64x128xf32> to vector<1x128xf32>
    %2 = vector.shape_cast %1 : vector<1x128xf32> to vector<1x1x128xf32>
    %cst_2 = arith.constant 1.562500e-02 : f32
    %3 = vector.broadcast %cst_2 : f32 to vector<1x1x128xf32>
    %4 = arith.mulf %2, %3 : vector<1x1x128xf32>
    %c0_3 = arith.constant 0 : index
    %c0_4 = arith.constant 0 : index
    %c0_5 = arith.constant 0 : index
    %5 = vector.load %arg2[%c0_3, %c0_4, %c0_5] : memref<1x64x128xf32, #tpu.memory_space<vmem>>, vector<1x64x128xf32>
    %6 = vector.broadcast %4 : vector<1x1x128xf32> to vector<1x64x128xf32>
    %7 = arith.subf %5, %6 : vector<1x64x128xf32>
    %8 = arith.mulf %7, %7 : vector<1x64x128xf32>
    %cst_6 = arith.constant dense<0.000000e+00> : vector<1x128xf32>
    %9 = vector.multi_reduction <add>, %8, %cst_6 [1] : vector<1x64x128xf32> to vector<1x128xf32>
    %10 = vector.shape_cast %9 : vector<1x128xf32> to vector<1x1x128xf32>
    %cst_7 = arith.constant 1.562500e-02 : f32
    %11 = vector.broadcast %cst_7 : f32 to vector<1x1x128xf32>
    %12 = arith.mulf %10, %11 : vector<1x1x128xf32>
    %cst_8 = arith.constant 9.99999974E-6 : f32
    %13 = vector.broadcast %cst_8 : f32 to vector<1x1x128xf32>
    %14 = arith.addf %12, %13 : vector<1x1x128xf32>
    %15 = math.rsqrt %14 : vector<1x1x128xf32>
    %c0_9 = arith.constant 0 : index
    %c0_10 = arith.constant 0 : index
    %c0_11 = arith.constant 0 : index
    %16 = vector.load %arg2[%c0_9, %c0_10, %c0_11] : memref<1x64x128xf32, #tpu.memory_space<vmem>>, vector<1x64x128xf32>
    %17 = vector.broadcast %4 : vector<1x1x128xf32> to vector<1x64x128xf32>
    %18 = arith.subf %16, %17 : vector<1x64x128xf32>
    %19 = vector.broadcast %15 : vector<1x1x128xf32> to vector<1x64x128xf32>
    %20 = arith.mulf %18, %19 : vector<1x64x128xf32>
    %c0_12 = arith.constant 0 : index
    %c0_13 = arith.constant 0 : index
    %c0_14 = arith.constant 0 : index
    %21 = vector.load %arg3[%c0_12, %c0_13, %c0_14] : memref<1x64x1xf32, #tpu.memory_space<vmem>>, vector<1x64x1xf32>
    %22 = vector.broadcast %21 : vector<1x64x1xf32> to vector<1x64x128xf32>
    %23 = arith.mulf %20, %22 : vector<1x64x128xf32>
    %c0_15 = arith.constant 0 : index
    %c0_16 = arith.constant 0 : index
    %c0_17 = arith.constant 0 : index
    %24 = vector.load %arg4[%c0_15, %c0_16, %c0_17] : memref<1x64x1xf32, #tpu.memory_space<vmem>>, vector<1x64x1xf32>
    %25 = vector.broadcast %24 : vector<1x64x1xf32> to vector<1x64x128xf32>
    %26 = arith.addf %23, %25 : vector<1x64x128xf32>
    %c0_18 = arith.constant 0 : index
    %c0_19 = arith.constant 0 : index
    %c0_20 = arith.constant 0 : index
    %27 = vector.load %arg5[%c0_18, %c0_19, %c0_20] : memref<1x64x128xf32, #tpu.memory_space<vmem>>, vector<1x64x128xf32>
    tpu.vector_store %arg5[%c0_18, %c0_19, %c0_20], %26 {strides = array<i32>} : memref<1x64x128xf32, #tpu.memory_space<vmem>>, vector<1x64x128xf32>,
    return
  }
  func.func @transform_0(%arg0: i32, %arg1: i32) -> (i32, i32, i32) {
    %c0_i32 = arith.constant 0 : i32
    %c0_i32_0 = arith.constant 0 : i32
    return %arg0, %c0_i32, %arg1 : i32, i32, i32
  }
  func.func @transform_1(%arg0: i32, %arg1: i32) -> (i32, i32, i32) {
    %c0_i32 = arith.constant 0 : i32
    %c0_i32_0 = arith.constant 0 : i32
    %c0_i32_1 = arith.constant 0 : i32
    %c0_i32_2 = arith.constant 0 : i32
    return %c0_i32, %c0_i32_0, %c0_i32_1 : i32, i32, i32
  }
  func.func @transform_2(%arg0: i32, %arg1: i32) -> (i32, i32, i32) {
    %c0_i32 = arith.constant 0 : i32
    %c0_i32_0 = arith.constant 0 : i32
    %c0_i32_1 = arith.constant 0 : i32
    %c0_i32_2 = arith.constant 0 : i32
    return %c0_i32, %c0_i32_0, %c0_i32_1 : i32, i32, i32
  }
  func.func @transform_3(%arg0: i32, %arg1: i32) -> (i32, i32, i32) {
    %c0_i32 = arith.constant 0 : i32
    %c0_i32_0 = arith.constant 0 : i32
    return %arg0, %c0_i32, %arg1 : i32, i32, i32
  }
}

</mosaic_0001>

<llo_original>
// kernel: tpu_custom_call.1
$region0: #{tpu_custom_call.1}
  #allocation0 [shape = 'u32[]', space=smem, size = 0x4, offset = 0x4, fixed_abs, tag = 'smem constant byte address 0x4 - core index']
  #allocation1 [shape = 'u32[72,128]{1,0:T(1,128)}', space=vmem, size = 0x9000, scoped, tag = 'internal scratch']
  %s0 = inlined_call_operand.hbm [shape: f32[2,64,256], index: 0, kind: input, shape index: {}]
  %s1 = inlined_call_operand.vmem [shape: f32[1,64,1], index: 1, kind: input, shape index: {}]
  %s2 = inlined_call_operand.vmem [shape: f32[1,64,1], index: 2, kind: input, shape index: {}]
  %s3 = inlined_call_operand.hbm [shape: f32[2,64,256], index: 3, kind: output, shape index: {}]
  %s4 = sld [smem:[#allocation0]]
  $region49: #{tpu_custom_call.1} parent=0
    _
  %s6 = ssub.s32 1, %s4
  %s7 = scalar_select 0, %s6, %s4
  $region1: #{tpu_custom_call.1} parent=0
    #allocation2 [shape = 'u8[65536]{0}', space=vmem, size = 0x10000, scoped, tag = 'input window, operand 0']
    #allocation3 [shape = 's32[2]{0}', space=sflag, size = 0x8, scoped, tag = 'scoped memory for tpu_custom_call.1']
    #allocation4 [shape = 's32[2]{0}', space=sflag, size = 0x8, scoped, tag = 'scoped memory for tpu_custom_call.1']
    #allocation5 [shape = 'u8[65536]{0}', space=vmem, size = 0x10000, scoped, tag = 'output window, operand 0']
    %8 = vsyncpa [#allocation3], 0
    %s9 = scalar_lea.sflag [#allocation3], 1
    %10 = vsyncpa %s9, 0
    %11 = vsyncpa [#allocation4], 0
    %s12 = scalar_lea.sflag [#allocation4], 1
    %13 = vsyncpa %s12, 0
    loop: start=0, step=1, limit=6
    $region2: #{tpu_custom_call.1} parent=1 // loop_pre_header
      _
    $region3: #{tpu_custom_call.1} parent=1 // loop_header
      %s15 = sphi 0, %s19
      %p16 = scmp.ge.s32.totalorder %s15, 6
      %s22 = sphi 0, %s34
      %s23 = sphi 0, %s30
      %s24 = sphi 0, %s22
      %s25 = sphi 0, %s23
      %s26 = sphi 0, %s24
      %s27 = sphi 0, %s25
      %s39 = sphi 0, %s41
      %s42 = sphi 0, %s39
      %s43 = sphi 0, %s42
      %s59 = sphi 0, %s43
      %s63 = sphi 0, %s63
      %s65 = sphi 0, %s63
      %s66 = sphi 0, %s65
      %s80 = sphi 0, %s66
      %s84 = sphi 0, %s84
      %s86 = sphi 0, %s84
      %s87 = sphi 0, %s86
      %s101 = sphi 0, %s87
      %s109 = sphi 0, %s111
      %s112 = sphi 0, %s109
      %s113 = sphi 0, %s112
      %s129 = sphi 0, %s113
    $region4: #{tpu_custom_call.1} parent=1 // loop_header_branch
      %18 = sbr.rel (%p16) target = $region8
    $region5: #{tpu_custom_call.1} parent=1 // loop_body
      %s20 = ssub.s32 %s15, 1
      %s21 = ssub.s32 %s15, 2
      %s28 = sadd.s32 1, %s23
      %p29 = scmp.ge.s32.totalorder %s28, 2
      %s30 = scalar_select %p29, 0, %s28
      %s31 = sadd.s32 1, %s22
      %s32 = scalar_select %p29, %s31, %s22
      %p33 = scmp.ge.s32.totalorder %s32, 2
      %s34 = scalar_select %p33, 0, %s32
      %s35 = ssub.s32 %s22, %s34
      %s36 = ssub.s32 %s23, %s30
      %s37 = sor.u32 %s35, %s36
      %p38 = scmp.eq.s32.totalorder %s37, 0
      %s40 = sadd.s32 %s39, 1
      %s41 = scalar_select %p38, %s39, %s40
      %p44 = pneg %p38
      %p45 = scmp.eq.s32.totalorder %s15, 3
      %p46 = por %p44, %p45
      %p47 = scmp.ne.s32.totalorder %s39, %s42
      %p48 = scmp.eq.s32.totalorder %s15, 0
      %p49 = por %p47, %p48
      %p50 = scmp.ne.s32.totalorder %s39, %s42
      %p51 = scmp.eq.s32.totalorder %s20, 3
      %p52 = por %p50, %p51
      %p53 = scmp.ne.s32.totalorder %s42, %s43
      %p54 = scmp.eq.s32.totalorder %s20, 0
      %p55 = por %p53, %p54
      %p56 = scmp.ne.s32.totalorder %s42, %s43
      %p57 = scmp.eq.s32.totalorder %s21, 3
      %p58 = por %p56, %p57
      %p60 = scmp.ne.s32.totalorder %s43, %s59
      %p61 = scmp.eq.s32.totalorder %s21, 0
      %p62 = por %p60, %p61
      %s64 = sadd.s32 %s63, 1
      %p67 = scmp.eq.s32.totalorder %s15, 3
      %p68 = scmp.ne.s32.totalorder %s63, %s65
      %p69 = scmp.eq.s32.totalorder %s15, 0
      %p70 = por %p68, %p69
      %p71 = scmp.ne.s32.totalorder %s63, %s65
      %p72 = scmp.eq.s32.totalorder %s20, 3
      %p73 = por %p71, %p72
      %p74 = scmp.ne.s32.totalorder %s65, %s66
      %p75 = scmp.eq.s32.totalorder %s20, 0
      %p76 = por %p74, %p75
      %p77 = scmp.ne.s32.totalorder %s65, %s66
      %p78 = scmp.eq.s32.totalorder %s21, 3
      %p79 = por %p77, %p78
      %p81 = scmp.ne.s32.totalorder %s66, %s80
      %p82 = scmp.eq.s32.totalorder %s21, 0
      %p83 = por %p81, %p82
      %s85 = sadd.s32 %s84, 1
      %p88 = scmp.eq.s32.totalorder %s15, 3
      %p89 = scmp.ne.s32.totalorder %s84, %s86
      %p90 = scmp.eq.s32.totalorder %s15, 0
      %p91 = por %p89, %p90
      %p92 = scmp.ne.s32.totalorder %s84, %s86
      %p93 = scmp.eq.s32.totalorder %s20, 3
      %p94 = por %p92, %p93
      %p95 = scmp.ne.s32.totalorder %s86, %s87
      %p96 = scmp.eq.s32.totalorder %s20, 0
      %p97 = por %p95, %p96
      %p98 = scmp.ne.s32.totalorder %s86, %s87
      %p99 = scmp.eq.s32.totalorder %s21, 3
      %p100 = por %p98, %p99
      %p102 = scmp.ne.s32.totalorder %s87, %s101
      %p103 = scmp.eq.s32.totalorder %s21, 0
      %p104 = por %p102, %p103
      %s105 = ssub.s32 %s22, %s34
      %s106 = ssub.s32 %s23, %s30
      %s107 = sor.u32 %s105, %s106
      %p108 = scmp.eq.s32.totalorder %s107, 0
      %s110 = sadd.s32 %s109, 1
      %s111 = scalar_select %p108, %s109, %s110
      %p114 = pneg %p108
      %p115 = scmp.eq.s32.totalorder %s15, 3
      %p116 = por %p114, %p115
      %p117 = scmp.ne.s32.totalorder %s109, %s112
      %p118 = scmp.eq.s32.totalorder %s15, 0
      %p119 = por %p117, %p118
      %p120 = scmp.ne.s32.totalorder %s109, %s112
      %p121 = scmp.eq.s32.totalorder %s20, 3
      %p122 = por %p120, %p121
      %p123 = scmp.ne.s32.totalorder %s112, %s113
      %p124 = scmp.eq.s32.totalorder %s20, 0
      %p125 = por %p123, %p124
      %p126 = scmp.ne.s32.totalorder %s112, %s113
      %p127 = scmp.eq.s32.totalorder %s21, 3
      %p128 = por %p126, %p127
      %p130 = scmp.ne.s32.totalorder %s113, %s129
      %p131 = scmp.eq.s32.totalorder %s21, 0
      %p132 = por %p130, %p131
      %p133 = scmp.le.s32.totalorder 1, %s15
      %p134 = scmp.lt.s32.totalorder %s15, 5
      %p135 = pnand %p133, %p134
      %p136 = pneg %p135
      // Predicated region
      $region9: #{tpu_custom_call.1} parent=5 // pred_check
        _
      $region10: #{tpu_custom_call.1} parent=5 // pred_check_branch
        %138 = sbr.rel (%p135) target = $region12
      $region11: #{tpu_custom_call.1} parent=5 // pred_region
        %s139 = ssub.s32 %s15, 1
        // Predicated region
        $region13: #{tpu_custom_call.1} parent=11 // pred_check
          %p140 = pneg %p76
        $region14: #{tpu_custom_call.1} parent=11 // pred_check_branch
          %142 = sbr.rel (%p140) target = $region16
        $region15: #{tpu_custom_call.1} parent=11 // pred_region
          _
        $region16: #{tpu_custom_call.1} parent=11 // pred_fallthru
          _
        // Predicated region
        $region17: #{tpu_custom_call.1} parent=11 // pred_check
          %p143 = pneg %p97
        $region18: #{tpu_custom_call.1} parent=11 // pred_check_branch
          %145 = sbr.rel (%p143) target = $region20
        $region19: #{tpu_custom_call.1} parent=11 // pred_region
          _
        $region20: #{tpu_custom_call.1} parent=11 // pred_fallthru
          _
      $region12: #{tpu_custom_call.1} parent=5 // pred_fallthru
        _
      %p146 = scmp.lt.s32.totalorder %s15, 4
      // Predicated region
      $region21: #{tpu_custom_call.1} parent=5 // pred_check
        %p147 = pneg %p146
      $region22: #{tpu_custom_call.1} parent=5 // pred_check_branch
        %149 = sbr.rel (%p147) target = $region24
      $region23: #{tpu_custom_call.1} parent=5 // pred_region
        // Predicated region
        $region25: #{tpu_custom_call.1} parent=23 // pred_check
          %p150 = pneg %p49
        $region26: #{tpu_custom_call.1} parent=23 // pred_check_branch
          %152 = sbr.rel (%p150) target = $region28
        $region27: #{tpu_custom_call.1} parent=23 // pred_region
          %s153 = sand.u32 %s39, 1
          %s154 = scalar_lea.sflag [#allocation3], %s153
          %s155 = sand.u32 %s39, 1
          %s156 = smul.addr %s155, 64
          %s157 = scalar_lea.vmem [#allocation2], %s156
          %159 = vsyncadd %s154, 0
          %s160 = smul.addr %s22, 16
          %s161 = sadd.s32 %s23, %s160
          %s162 = smul.addr %s161, 8
          %s163 = scalar_lea.hbm %s0, %s162
          %s164 = sshll.u32 %s163, 4
          %s165 = int_to_ptr.hbm [resolvable:$true] %s164
          %s166 = sshll.u32 %s157, 4
          %s167 = int_to_ptr.vmem [resolvable:$true] %s166
          %172 = dma.hbm_to_vmem [thread:$0]  %s165, 1024, %s167, %s154, 256, 128, 8
        $region28: #{tpu_custom_call.1} parent=23 // pred_fallthru
          _
      $region24: #{tpu_custom_call.1} parent=5 // pred_fallthru
        _
      %p173 = scmp.le.s32.totalorder 1, %s15
      %p174 = scmp.lt.s32.totalorder %s15, 5
      %p175 = pnand %p173, %p174
      %p176 = pneg %p175
      // Predicated region
      $region29: #{tpu_custom_call.1} parent=5 // pred_check
        _
      $region30: #{tpu_custom_call.1} parent=5 // pred_check_branch
        %178 = sbr.rel (%p175) target = $region32
      $region31: #{tpu_custom_call.1} parent=5 // pred_region
        %s179 = ssub.s32 %s15, 1
        %s180 = sand.u32 %s42, 1
        %s181 = scalar_lea.sflag [#allocation3], %s180
        %s182 = sand.u32 %s42, 1
        %s183 = smul.addr %s182, 64
        %s184 = scalar_lea.vmem [#allocation2], %s183
        // Predicated region
        $region33: #{tpu_custom_call.1} parent=31 // pred_check
          %p185 = pneg %p55
        $region34: #{tpu_custom_call.1} parent=31 // pred_check_branch
          %187 = sbr.rel (%p185) target = $region36
        $region35: #{tpu_custom_call.1} parent=31 // pred_region
          %189 = dma.done %s181, 1024
        $region36: #{tpu_custom_call.1} parent=31 // pred_fallthru
          _
        %s190 = sand.u32 %s42, 1
        %s191 = scalar_lea.sflag [#allocation3], %s190
        %s192 = sand.u32 %s42, 1
        %s193 = smul.addr %s192, 64
        %s194 = scalar_lea.vmem [#allocation2], %s193
        %p195 = pneg %p55
        %p196 = pneg %p52
        %p197 = pneg %p76
        %p198 = pneg %p73
        %p199 = pneg %p97
        %p200 = pneg %p94
        %p201 = pneg %p125
        %p202 = pneg %p122
        %s203 = sand.u32 %s112, 1
        %s204 = scalar_lea.sflag [#allocation4], %s203
        %s205 = sand.u32 %s112, 1
        %s206 = smul.addr %s205, 64
        %s207 = scalar_lea.vmem [#allocation5], %s206
        %v208 = vld [vmem:[%s184] sm:$0xff]
        %v209 = vld [vmem:[%s184 + $0x8] sm:$0xff]
        %v210 = vld [vmem:[%s184 + $0x10] sm:$0xff]
        %v211 = vld [vmem:[%s184 + $0x18] sm:$0xff]
        %v212 = vld [vmem:[%s184 + $0x20] sm:$0xff]
        %v213 = vld [vmem:[%s184 + $0x28] sm:$0xff]
        %v214 = vld [vmem:[%s184 + $0x30] sm:$0xff]
        %v215 = vld [vmem:[%s184 + $0x38] sm:$0xff]
        %v216 = vadd.f32 %v208, %v209
        %v217 = vadd.f32 %v216, %v210
        %v218 = vadd.f32 %v217, %v211
        %v219 = vadd.f32 %v218, %v212
        %v220 = vadd.f32 %v219, %v213
        %v221 = vadd.f32 %v220, %v214
        %v222 = vadd.f32 %v221, %v215
        %v223 = vrot.slane %v222, 4
        %v224 = vadd.f32 %v222, %v223
        %v225 = vrot.slane %v224, 2
        %v226 = vadd.f32 %v224, %v225
        %v227 = vrot.slane %v226, 1
        %v228 = vadd.f32 %v226, %v227
        %v229 = vmul.f32 %v228, 0.015625
        %v230 = vsub.f32 %v208, %v229
        %v231 = vsub.f32 %v209, %v229
        %v232 = vsub.f32 %v210, %v229
        %v233 = vsub.f32 %v211, %v229
        %v234 = vsub.f32 %v212, %v229
        %v235 = vsub.f32 %v213, %v229
        %v236 = vsub.f32 %v214, %v229
        %v237 = vsub.f32 %v215, %v229
        %v238 = vmul.f32 %v230, %v230
        %v239 = vmul.f32 %v231, %v231
        %v240 = vmul.f32 %v232, %v232
        %v241 = vmul.f32 %v233, %v233
        %v242 = vmul.f32 %v234, %v234
        %v243 = vmul.f32 %v235, %v235
        %v244 = vmul.f32 %v236, %v236
        %v245 = vmul.f32 %v237, %v237
        %v246 = vadd.f32 %v238, %v239
        %v247 = vadd.f32 %v246, %v240
        %v248 = vadd.f32 %v247, %v241
        %v249 = vadd.f32 %v248, %v242
        %v250 = vadd.f32 %v249, %v243
        %v251 = vadd.f32 %v250, %v244
        %v252 = vadd.f32 %v251, %v245
        %v253 = vrot.slane %v252, 4
        %v254 = vadd.f32 %v252, %v253
        %v255 = vrot.slane %v254, 2
        %v256 = vadd.f32 %v254, %v255
        %v257 = vrot.slane %v256, 1
        %v258 = vadd.f32 %v256, %v257
        %v259 = vmul.f32 %v258, 0.015625
        %v260 = vadd.f32 %v259, 1e-05
        %v261 = vrsqrt.pop %v260
        %v262 = vmul.f32 %v261, %v260
        %v263 = vmul.f32 %v262, %v261
        %v264 = vmul.f32 0.5, %v263
        %v265 = vsub.f32 1.5, %v264
        %v266 = vmul.f32 %v261, %v265
        %vm267 = vweird.f32 %v260
        %vm268 = vweird.f32 %v261
        %vm269 = vmor %vm267, %vm268
        %v270 = vsel %vm269, %v261, %v266
        %v271 = vmul.f32 %v230, %v270
        %v272 = vmul.f32 %v231, %v270
        %v273 = vmul.f32 %v232, %v270
        %v274 = vmul.f32 %v233, %v270
        %v275 = vmul.f32 %v234, %v270
        %v276 = vmul.f32 %v235, %v270
        %v277 = vmul.f32 %v236, %v270
        %v278 = vmul.f32 %v237, %v270
        %v279 = vld [vmem:[%s1] sm:$0xff]
        %v280 = vld [vmem:[%s1 + $0x8] sm:$0xff]
        %v281 = vld [vmem:[%s1 + $0x10] sm:$0xff]
        %v282 = vld [vmem:[%s1 + $0x18] sm:$0xff]
        %v283 = vld [vmem:[%s1 + $0x20] sm:$0xff]
        %v284 = vld [vmem:[%s1 + $0x28] sm:$0xff]
        %v285 = vld [vmem:[%s1 + $0x30] sm:$0xff]
        %v286 = vld [vmem:[%s1 + $0x38] sm:$0xff]
        %288 = vset.pattern.permute.xlu0 0
        %289 = vperm.xlu0 %288, %v279
        %v290 = vpop.permute.xlu0 %289
        %293 = vset.pattern.permute.xlu0 0
        %294 = vperm.xlu0 %293, %v280
        %v295 = vpop.permute.xlu0 %294
        %298 = vset.pattern.permute.xlu0 0
        %299 = vperm.xlu0 %298, %v281
        %v300 = vpop.permute.xlu0 %299
        %303 = vset.pattern.permute.xlu0 0
        %304 = vperm.xlu0 %303, %v282
        %v305 = vpop.permute.xlu0 %304
        %308 = vset.pattern.permute.xlu0 0
        %309 = vperm.xlu0 %308, %v283
        %v310 = vpop.permute.xlu0 %309
        %313 = vset.pattern.permute.xlu0 0
        %314 = vperm.xlu0 %313, %v284
        %v315 = vpop.permute.xlu0 %314
        %318 = vset.pattern.permute.xlu0 0
        %319 = vperm.xlu0 %318, %v285
        %v320 = vpop.permute.xlu0 %319
        %323 = vset.pattern.permute.xlu0 0
        %324 = vperm.xlu0 %323, %v286
        %v325 = vpop.permute.xlu0 %324
        %v327 = vmul.f32 %v271, %v290
        %v328 = vmul.f32 %v272, %v295
        %v329 = vmul.f32 %v273, %v300
        %v330 = vmul.f32 %v274, %v305
        %v331 = vmul.f32 %v275, %v310
        %v332 = vmul.f32 %v276, %v315
        %v333 = vmul.f32 %v277, %v320
        %v334 = vmul.f32 %v278, %v325
        %v335 = vld [vmem:[%s2] sm:$0xff]
        %v336 = vld [vmem:[%s2 + $0x8] sm:$0xff]
        %v337 = vld [vmem:[%s2 + $0x10] sm:$0xff]
        %v338 = vld [vmem:[%s2 + $0x18] sm:$0xff]
        %v339 = vld [vmem:[%s2 + $0x20] sm:$0xff]
        %v340 = vld [vmem:[%s2 + $0x28] sm:$0xff]
        %v341 = vld [vmem:[%s2 + $0x30] sm:$0xff]
        %v342 = vld [vmem:[%s2 + $0x38] sm:$0xff]
        %344 = vset.pattern.permute.xlu0 0
        %345 = vperm.xlu0 %344, %v335
        %v346 = vpop.permute.xlu0 %345
        %349 = vset.pattern.permute.xlu0 0
        %350 = vperm.xlu0 %349, %v336
        %v351 = vpop.permute.xlu0 %350
        %354 = vset.pattern.permute.xlu0 0
        %355 = vperm.xlu0 %354, %v337
        %v356 = vpop.permute.xlu0 %355
        %359 = vset.pattern.permute.xlu0 0
        %360 = vperm.xlu0 %359, %v338
        %v361 = vpop.permute.xlu0 %360
        %364 = vset.pattern.permute.xlu0 0
        %365 = vperm.xlu0 %364, %v339
        %v366 = vpop.permute.xlu0 %365
        %369 = vset.pattern.permute.xlu0 0
        %370 = vperm.xlu0 %369, %v340
        %v371 = vpop.permute.xlu0 %370
        %374 = vset.pattern.permute.xlu0 0
        %375 = vperm.xlu0 %374, %v341
        %v376 = vpop.permute.xlu0 %375
        %379 = vset.pattern.permute.xlu0 0
        %380 = vperm.xlu0 %379, %v342
        %v381 = vpop.permute.xlu0 %380
        %v383 = vadd.f32 %v327, %v346
        %v384 = vadd.f32 %v328, %v351
        %v385 = vadd.f32 %v329, %v356
        %v386 = vadd.f32 %v330, %v361
        %v387 = vadd.f32 %v331, %v366
        %v388 = vadd.f32 %v332, %v371
        %v389 = vadd.f32 %v333, %v376
        %v390 = vadd.f32 %v334, %v381
        %391 = vst [vmem:[%s207] sm:$0xff] %v383
        %392 = vst [vmem:[%s207 + $0x8] sm:$0xff] %v384
        %393 = vst [vmem:[%s207 + $0x10] sm:$0xff] %v385
        %394 = vst [vmem:[%s207 + $0x18] sm:$0xff] %v386
        %395 = vst [vmem:[%s207 + $0x20] sm:$0xff] %v387
        %396 = vst [vmem:[%s207 + $0x28] sm:$0xff] %v388
        %397 = vst [vmem:[%s207 + $0x30] sm:$0xff] %v389
        %398 = vst [vmem:[%s207 + $0x38] sm:$0xff] %v390
        %s399 = sand.u32 %s112, 1
        %s400 = scalar_lea.sflag [#allocation4], %s399
        %s401 = sand.u32 %s112, 1
        %s402 = smul.addr %s401, 64
        %s403 = scalar_lea.vmem [#allocation5], %s402
        // Predicated region
        $region37: #{tpu_custom_call.1} parent=31 // pred_check
          %p404 = pneg %p122
        $region38: #{tpu_custom_call.1} parent=31 // pred_check_branch
          %406 = sbr.rel (%p404) target = $region40
        $region39: #{tpu_custom_call.1} parent=31 // pred_region
          %408 = vsyncadd %s400, 0
          %s409 = smul.addr %s24, 16
          %s410 = sadd.s32 %s25, %s409
          %s411 = smul.addr %s410, 8
          %s412 = scalar_lea.hbm %s3, %s411
          %s413 = sshll.u32 %s403, 4
          %s414 = int_to_ptr.vmem [resolvable:$true] %s413
          %s415 = sshll.u32 %s412, 4
          %s416 = int_to_ptr.hbm [resolvable:$true] %s415
          %421 = dma.vmem_to_hbm [thread:$0]  %s414, 1024, %s416, %s400, 128, 256, 8
        $region40: #{tpu_custom_call.1} parent=31 // pred_fallthru
          _
      $region32: #{tpu_custom_call.1} parent=5 // pred_fallthru
        _
      %p422 = scmp.le.s32.totalorder 2, %s15
      // Predicated region
      $region41: #{tpu_custom_call.1} parent=5 // pred_check
        %p423 = pneg %p422
      $region42: #{tpu_custom_call.1} parent=5 // pred_check_branch
        %425 = sbr.rel (%p423) target = $region44
      $region43: #{tpu_custom_call.1} parent=5 // pred_region
        %s426 = ssub.s32 %s15, 2
        // Predicated region
        $region45: #{tpu_custom_call.1} parent=43 // pred_check
          %p427 = pneg %p128
        $region46: #{tpu_custom_call.1} parent=43 // pred_check_branch
          %429 = sbr.rel (%p427) target = $region48
        $region47: #{tpu_custom_call.1} parent=43 // pred_region
          %s430 = sand.u32 %s113, 1
          %s431 = scalar_lea.sflag [#allocation4], %s430
          %s432 = sand.u32 %s113, 1
          %s433 = smul.addr %s432, 64
          %s434 = scalar_lea.vmem [#allocation5], %s433
          %436 = dma.done %s431, 1024
        $region48: #{tpu_custom_call.1} parent=43 // pred_fallthru
          _
      $region44: #{tpu_custom_call.1} parent=5 // pred_fallthru
        _
    $region6: #{tpu_custom_call.1} parent=1 // loop_footer
      %s19 = sadd.s32 1, %s15
    $region7: #{tpu_custom_call.1} parent=1 // loop_footer_branch
      %14 = sbr.rel target = $region3
    $region8: #{tpu_custom_call.1} parent=1 // loop_exit
      _
    %437 = vsyncpa [#allocation3], 1
    %s438 = scalar_lea.sflag [#allocation3], 1
    %439 = vsyncpa %s438, 1
    %440 = vsyncpa [#allocation4], 1
    %s441 = scalar_lea.sflag [#allocation4], 1
    %442 = vsyncpa %s441, 1

</llo_original>
